<compile_context>
chip_gen: v6e
topology: v6e:2x2x1
jax: 0.10.0
libtpu: 0.0.40
codegen_flags: <defaults>
</compile_context>

<pallas_src>
import functools

import jax
import jax.numpy as jnp
from jax.experimental import pallas as pl
from jax.experimental.pallas import tpu as pltpu

LANES = 128  # lane padding for the packed parameter slab


# ----------------------------------------------------------------------------
# Kernel: whole sequence in one invocation, fully VMEM-resident
# ----------------------------------------------------------------------------
def encoder_kernel(x_ref, p_ref, out_ref, *, seq_len, batch, in_size, hidden,
                   out_size):
    I, H, O, BP = in_size, hidden, out_size, batch

    # Static, tile-aligned views into the packed parameter slab (one DMA).
    r_ih = 0           # rows [0, 8)        : W_ih^T  (I, 3H), zero-padded
    r_hh = 8           # rows [8, 8+H)      : W_hh^T  (H, 3H)
    r_ln = 8 + H       # rows [8+H, 8+2H)   : W_lin^T (H, O)
    r_b = 8 + 2 * H    # rows [8+2H, ...)   : bias rows (b_fold, b_hn, b_lin)

    w_ih = p_ref[r_ih:r_ih + I, 0:3 * H]           # (I, 3H)
    w_hh = p_ref[r_hh:r_hh + H, 0:3 * H]           # (H, 3H)
    w_lin = p_ref[r_ln:r_ln + H, 0:O]              # (H, O)
    b_fold = p_ref[r_b:r_b + 1, 0:3 * H]           # (1, 3H)  b_ih + b_hh(r,z)
    b_hn = p_ref[r_b + 1:r_b + 2, 0:H]             # (1, H)
    b_lin = p_ref[r_b + 2:r_b + 3, 0:O]            # (1, O)

    # ---- Hoisted input projection for ALL timesteps (one MXU push) ----------
    gi = (jnp.dot(x_ref[...], w_ih, preferred_element_type=jnp.float32)
          + b_fold)                                 # (T*BP, 3H)

    # Hoist the b_hn broadcast out of the unrolled loop (no CSE inside loops).
    b_hn_b = jnp.broadcast_to(b_hn, (BP, H))

    # ---- Sequential GRU recurrence (fully unrolled; T is small) -------------
    # One fused (BP,H)@(H,3H) recurrent matmul per step; h tiles stay in vregs.
    h = jnp.zeros((BP, H), jnp.float32)
    hs = []
    for t in range(seq_len):
        row = t * BP                                    # sublane-aligned (BP=8)
        gi_t = gi[row:row + BP, :]                      # (BP, 3H), aligned tile
        gh = jnp.dot(h, w_hh, preferred_element_type=jnp.float32)   # (BP, 3H)
        r = jax.nn.sigmoid(gi_t[:, 0:H] + gh[:, 0:H])
        z = jax.nn.sigmoid(gi_t[:, H:2 * H] + gh[:, H:2 * H])
        n = jnp.tanh(gi_t[:, 2 * H:3 * H] + r * (gh[:, 2 * H:3 * H] + b_hn_b))
        h = (1.0 - z) * n + z * h
        hs.append(h)

    # ---- Batched Linear head: one (T*BP, H) @ (H, O) matmul, single store ---
    hall = jnp.concatenate(hs, axis=0)                  # (T*BP, H), in registers
    out_ref[...] = (jnp.dot(hall, w_lin, preferred_element_type=jnp.float32)
                    + b_lin)


# ----------------------------------------------------------------------------
# Wrapper (takes PyTorch-style parameters, pre-transposed)
# ----------------------------------------------------------------------------
@jax.jit
def encoder_forward(x, wihT, whhT, bih, bhh, wlinT, blin):
    T, B, I = x.shape
    H = whhT.shape[0]
    O = wlinT.shape[1]
    BP = 8  # pad batch to a full sublane tile

    assert B <= BP and 3 * H <= LANES and O <= LANES and I <= 8

    # --- Host/XLA-side prep (done once per call, outside the kernel) ---------
    # Pad the batch to 8 and flatten: every per-step tile becomes aligned.
    x_pad = jnp.pad(x, ((0, 0), (0, BP - B), (0, 0)))
    x2d = x_pad.reshape(T * BP, I)

    # Fold b_hh for the r,z gates into the input-projection bias; keep b_hn.
    b_fold = bih + jnp.concatenate(
        [bhh[:, :2 * H], jnp.zeros((1, H), bhh.dtype)], axis=1)   # (1, 3H)
    bhh_n = bhh[:, 2 * H:3 * H]                                   # (1, H)

    # Pack all parameters into a single lane-padded (., 128) slab -> one DMA.
    def pad_block(m, rows):
        r, c = m.shape
        return jnp.pad(m, ((0, rows - r), (0, LANES - c)))

    bias_block = jnp.zeros((8, LANES), jnp.float32)
    bias_block = bias_block.at[0, :3 * H].set(b_fold[0])
    bias_block = bias_block.at[1, :H].set(bhh_n[0])
    bias_block = bias_block.at[2, :O].set(blin[0])

    p_slab = jnp.concatenate([
        pad_block(wihT, 8),      # rows [0, 8)
        pad_block(whhT, H),      # rows [8, 8+H)
        pad_block(wlinT, H),     # rows [8+H, 8+2H)
        bias_block,              # rows [8+2H, 16+2H)
    ], axis=0)                   # (16 + 2H, 128)

    P_ROWS = 16 + 2 * H

    kernel = functools.partial(encoder_kernel, seq_len=T, batch=BP,
                               in_size=I, hidden=H, out_size=O)

    out2d = pl.pallas_call(
        kernel,
        out_shape=jax.ShapeDtypeStruct((T * BP, O), jnp.float32),
        grid_spec=pltpu.PrefetchScalarGridSpec(
            num_scalar_prefetch=0,
            grid=(1,),
            in_specs=[
                pl.BlockSpec((T * BP, I), lambda i: (0, 0)),     # x (padded)
                pl.BlockSpec((P_ROWS, LANES), lambda i: (0, 0)),  # param slab
            ],
            out_specs=pl.BlockSpec((T * BP, O), lambda i: (0, 0)),
        ),
        compiler_params=pltpu.CompilerParams(
            dimension_semantics=("arbitrary",)),
    )(x2d, p_slab)

    # Drop the padded batch rows.
    return out2d.reshape(T, BP, O)[:, :B, :]


# ----------------------------------------------------------------------------
# Pure-JAX reference (mirrors torch.nn.GRU + nn.Linear semantics)
# ----------------------------------------------------------------------------
def encoder_reference(x, wihT, whhT, bih, bhh, wlinT, blin):
    T, B, I = x.shape
    H = whhT.shape[0]

    def step(h, x_t):
        gi = x_t @ wihT + bih
        gh = h @ whhT + bhh
        r = jax.nn.sigmoid(gi[:, 0:H] + gh[:, 0:H])
        z = jax.nn.sigmoid(gi[:, H:2 * H] + gh[:, H:2 * H])
        n = jnp.tanh(gi[:, 2 * H:3 * H] + r * gh[:, 2 * H:3 * H])
        h_new = (1.0 - z) * n + z * h
        return h_new, h_new

    h0 = jnp.zeros((B, H), jnp.float32)
    _, hs = jax.lax.scan(step, h0, x)
    return hs @ wlinT + blin


# ----------------------------------------------------------------------------
# Main
# ----------------------------------------------------------------------------
if __name__ == "__main__":
    # Shapes consistent with the Lorenz latent-SDE encoder:
    # input_size=3 (Lorenz state), hidden_size=32, output_size=8, seq=8, batch=4.
    T, B, I, H, O = 8, 4, 3, 32, 8

    key = jax.random.PRNGKey(0)
    k = jax.random.split(key, 8)
    bound = 1.0 / jnp.sqrt(H)

    # PyTorch-style U(-1/sqrt(H), 1/sqrt(H)) params, stored pre-transposed:
    # W_ih^T (I, 3H), W_hh^T (H, 3H), W_lin^T (H, O); gate order (r, z, n).
    wihT = jax.random.uniform(k[0], (I, 3 * H), jnp.float32, -bound, bound)
    whhT = jax.random.uniform(k[1], (H, 3 * H), jnp.float32, -bound, bound)
    bih = jax.random.uniform(k[2], (1, 3 * H), jnp.float32, -bound, bound)
    bhh = jax.random.uniform(k[3], (1, 3 * H), jnp.float32, -bound, bound)
    wlinT = jax.random.uniform(k[4], (H, O), jnp.float32, -bound, bound)
    blin = jax.random.uniform(k[5], (1, O), jnp.float32, -bound, bound)

    x = jax.random.normal(k[6], (T, B, I), jnp.float32)

    out = encoder_forward(x, wihT, whhT, bih, bhh, wlinT, blin)
    out = jax.block_until_ready(out)

    ref = encoder_reference(x, wihT, whhT, bih, bhh, wlinT, blin)
    assert out.shape == (T, B, O)
    assert jnp.allclose(out, ref, atol=1e-5, rtol=1e-5), "mismatch vs reference"

    print("KERNEL_OK")
</pallas_src>

<mosaic_0001>
module attributes {stable_mosaic.version = 11 : i64} {
  func.func @encoder_kernel(%arg0: i32, %arg1: memref<64x3xf32, #tpu.memory_space<vmem>>, %arg2: memref<80x128xf32, #tpu.memory_space<vmem>>, %arg3: memref<64x8xf32, #tpu.memory_space<vmem>>) attributes {dimension_semantics = [#tpu.dimension_semantics<arbitrary>], iteration_bounds = array<i64: 1>, scalar_prefetch = 0 : i64, scratch_operands = 0 : i64, tpu.core_type = #tpu.core_type<tc>, window_params = [{pipeline_mode = #tpu.pipeline_mode<synchronous>, transform_indices = @transform_0, window_bounds = array<i64: 64, 3>}, {pipeline_mode = #tpu.pipeline_mode<synchronous>, transform_indices = @transform_1, window_bounds = array<i64: 80, 128>}, {pipeline_mode = #tpu.pipeline_mode<synchronous>, transform_indices = @transform_2, window_bounds = array<i64: 64, 8>}]} {
    %c0 = arith.constant 0 : index
    %c0_0 = arith.constant 0 : index
    %0 = vector.load %arg2[%c0, %c0_0] : memref<80x128xf32, #tpu.memory_space<vmem>>, vector<3x96xf32>
    %c8 = arith.constant 8 : index
    %c0_1 = arith.constant 0 : index
    %1 = vector.load %arg2[%c8, %c0_1] : memref<80x128xf32, #tpu.memory_space<vmem>>, vector<32x96xf32>
    %c40 = arith.constant 40 : index
    %c0_2 = arith.constant 0 : index
    %2 = vector.load %arg2[%c40, %c0_2] : memref<80x128xf32, #tpu.memory_space<vmem>>, vector<32x8xf32>
    %c72 = arith.constant 72 : index
    %c0_3 = arith.constant 0 : index
    %3 = vector.load %arg2[%c72, %c0_3] : memref<80x128xf32, #tpu.memory_space<vmem>>, vector<1x96xf32>
    %c73 = arith.constant 73 : index
    %c0_4 = arith.constant 0 : index
    %4 = vector.load %arg2[%c73, %c0_4] : memref<80x128xf32, #tpu.memory_space<vmem>>, vector<1x32xf32>
    %c74 = arith.constant 74 : index
    %c0_5 = arith.constant 0 : index
    %5 = vector.load %arg2[%c74, %c0_5] : memref<80x128xf32, #tpu.memory_space<vmem>>, vector<1x8xf32>
    %c0_6 = arith.constant 0 : index
    %c0_7 = arith.constant 0 : index
    %6 = vector.load %arg1[%c0_6, %c0_7] : memref<64x3xf32, #tpu.memory_space<vmem>>, vector<64x3xf32>
    %cst = arith.constant dense<0.000000e+00> : vector<64x96xf32>
    %7 = tpu.matmul %6, %0, %cst {dimension_numbers = #tpu.dot_dimension_numbers<[1], [0], [0], [1], [0, 0, 1, 1], [], []>} : vector<64x3xf32>, vector<3x96xf32>, vector<64x96xf32> -> vector<64x96xf32>
    %8 = vector.broadcast %3 : vector<1x96xf32> to vector<64x96xf32>
    %9 = arith.addf %7, %8 : vector<64x96xf32>
    %10 = vector.shape_cast %4 : vector<1x32xf32> to vector<1x32xf32>
    %11 = vector.broadcast %10 : vector<1x32xf32> to vector<8x32xf32>
    %cst_8 = arith.constant 0.000000e+00 : f32
    %12 = vector.broadcast %cst_8 : f32 to vector<8x32xf32>
    %13 = vector.extract_strided_slice %9 {offsets = [0, 0], sizes = [8, 96], strides = [1, 1]} : vector<64x96xf32> to vector<8x96xf32>
    %cst_9 = arith.constant dense<0.000000e+00> : vector<8x96xf32>
    %14 = tpu.matmul %12, %1, %cst_9 {dimension_numbers = #tpu.dot_dimension_numbers<[1], [0], [0], [1], [0, 0, 1, 1], [], []>} : vector<8x32xf32>, vector<32x96xf32>, vector<8x96xf32> -> vector<8x96xf32>
    %15 = vector.extract_strided_slice %13 {offsets = [0, 0], sizes = [8, 32], strides = [1, 1]} : vector<8x96xf32> to vector<8x32xf32>
    %16 = vector.extract_strided_slice %14 {offsets = [0, 0], sizes = [8, 32], strides = [1, 1]} : vector<8x96xf32> to vector<8x32xf32>
    %17 = arith.addf %15, %16 : vector<8x32xf32>
    %18 = arith.negf %17 : vector<8x32xf32>
    %19 = math.exp %18 : vector<8x32xf32>
    %cst_10 = arith.constant 1.000000e+00 : f32
    %20 = vector.broadcast %cst_10 : f32 to vector<8x32xf32>
    %21 = arith.addf %20, %19 : vector<8x32xf32>
    %22 = arith.divf %20, %21 : vector<8x32xf32>
    %23 = vector.extract_strided_slice %13 {offsets = [0, 32], sizes = [8, 32], strides = [1, 1]} : vector<8x96xf32> to vector<8x32xf32>
    %24 = vector.extract_strided_slice %14 {offsets = [0, 32], sizes = [8, 32], strides = [1, 1]} : vector<8x96xf32> to vector<8x32xf32>
    %25 = arith.addf %23, %24 : vector<8x32xf32>
    %26 = arith.negf %25 : vector<8x32xf32>
    %27 = math.exp %26 : vector<8x32xf32>
    %cst_11 = arith.constant 1.000000e+00 : f32
    %28 = vector.broadcast %cst_11 : f32 to vector<8x32xf32>
    %29 = arith.addf %28, %27 : vector<8x32xf32>
    %30 = arith.divf %28, %29 : vector<8x32xf32>
    %31 = vector.extract_strided_slice %13 {offsets = [0, 64], sizes = [8, 32], strides = [1, 1]} : vector<8x96xf32> to vector<8x32xf32>
    %32 = vector.extract_strided_slice %14 {offsets = [0, 64], sizes = [8, 32], strides = [1, 1]} : vector<8x96xf32> to vector<8x32xf32>
    %33 = arith.addf %32, %11 : vector<8x32xf32>
    %34 = arith.mulf %22, %33 : vector<8x32xf32>
    %35 = arith.addf %31, %34 : vector<8x32xf32>
    %36 = math.tanh %35 : vector<8x32xf32>
    %cst_12 = arith.constant 1.000000e+00 : f32
    %37 = vector.broadcast %cst_12 : f32 to vector<8x32xf32>
    %38 = arith.subf %37, %30 : vector<8x32xf32>
    %39 = arith.mulf %38, %36 : vector<8x32xf32>
    %40 = arith.mulf %30, %12 : vector<8x32xf32>
    %41 = arith.addf %39, %40 : vector<8x32xf32>
    %42 = vector.extract_strided_slice %9 {offsets = [8, 0], sizes = [8, 96], strides = [1, 1]} : vector<64x96xf32> to vector<8x96xf32>
    %cst_13 = arith.constant dense<0.000000e+00> : vector<8x96xf32>
    %43 = tpu.matmul %41, %1, %cst_13 {dimension_numbers = #tpu.dot_dimension_numbers<[1], [0], [0], [1], [0, 0, 1, 1], [], []>} : vector<8x32xf32>, vector<32x96xf32>, vector<8x96xf32> -> vector<8x96xf32>
    %44 = vector.extract_strided_slice %42 {offsets = [0, 0], sizes = [8, 32], strides = [1, 1]} : vector<8x96xf32> to vector<8x32xf32>
    %45 = vector.extract_strided_slice %43 {offsets = [0, 0], sizes = [8, 32], strides = [1, 1]} : vector<8x96xf32> to vector<8x32xf32>
    %46 = arith.addf %44, %45 : vector<8x32xf32>
    %47 = arith.negf %46 : vector<8x32xf32>
    %48 = math.exp %47 : vector<8x32xf32>
    %cst_14 = arith.constant 1.000000e+00 : f32
    %49 = vector.broadcast %cst_14 : f32 to vector<8x32xf32>
    %50 = arith.addf %49, %48 : vector<8x32xf32>
    %51 = arith.divf %49, %50 : vector<8x32xf32>
    %52 = vector.extract_strided_slice %42 {offsets = [0, 32], sizes = [8, 32], strides = [1, 1]} : vector<8x96xf32> to vector<8x32xf32>
    %53 = vector.extract_strided_slice %43 {offsets = [0, 32], sizes = [8, 32], strides = [1, 1]} : vector<8x96xf32> to vector<8x32xf32>
    %54 = arith.addf %52, %53 : vector<8x32xf32>
    %55 = arith.negf %54 : vector<8x32xf32>
    %56 = math.exp %55 : vector<8x32xf32>
    %cst_15 = arith.constant 1.000000e+00 : f32
    %57 = vector.broadcast %cst_15 : f32 to vector<8x32xf32>
    %58 = arith.addf %57, %56 : vector<8x32xf32>
    %59 = arith.divf %57, %58 : vector<8x32xf32>
    %60 = vector.extract_strided_slice %42 {offsets = [0, 64], sizes = [8, 32], strides = [1, 1]} : vector<8x96xf32> to vector<8x32xf32>
    %61 = vector.extract_strided_slice %43 {offsets = [0, 64], sizes = [8, 32], strides = [1, 1]} : vector<8x96xf32> to vector<8x32xf32>
    %62 = arith.addf %61, %11 : vector<8x32xf32>
    %63 = arith.mulf %51, %62 : vector<8x32xf32>
    %64 = arith.addf %60, %63 : vector<8x32xf32>
    %65 = math.tanh %64 : vector<8x32xf32>
    %cst_16 = arith.constant 1.000000e+00 : f32
    %66 = vector.broadcast %cst_16 : f32 to vector<8x32xf32>
    %67 = arith.subf %66, %59 : vector<8x32xf32>
    %68 = arith.mulf %67, %65 : vector<8x32xf32>
    %69 = arith.mulf %59, %41 : vector<8x32xf32>
    %70 = arith.addf %68, %69 : vector<8x32xf32>
    %71 = vector.extract_strided_slice %9 {offsets = [16, 0], sizes = [8, 96], strides = [1, 1]} : vector<64x96xf32> to vector<8x96xf32>
    %cst_17 = arith.constant dense<0.000000e+00> : vector<8x96xf32>
    %72 = tpu.matmul %70, %1, %cst_17 {dimension_numbers = #tpu.dot_dimension_numbers<[1], [0], [0], [1], [0, 0, 1, 1], [], []>} : vector<8x32xf32>, vector<32x96xf32>, vector<8x96xf32> -> vector<8x96xf32>
    %73 = vector.extract_strided_slice %71 {offsets = [0, 0], sizes = [8, 32], strides = [1, 1]} : vector<8x96xf32> to vector<8x32xf32>
    %74 = vector.extract_strided_slice %72 {offsets = [0, 0], sizes = [8, 32], strides = [1, 1]} : vector<8x96xf32> to vector<8x32xf32>
    %75 = arith.addf %73, %74 : vector<8x32xf32>
    %76 = arith.negf %75 : vector<8x32xf32>
    %77 = math.exp %76 : vector<8x32xf32>
    %cst_18 = arith.constant 1.000000e+00 : f32
    %78 = vector.broadcast %cst_18 : f32 to vector<8x32xf32>
    %79 = arith.addf %78, %77 : vector<8x32xf32>
    %80 = arith.divf %78, %79 : vector<8x32xf32>
    %81 = vector.extract_strided_slice %71 {offsets = [0, 32], sizes = [8, 32], strides = [1, 1]} : vector<8x96xf32> to vector<8x32xf32>
    %82 = vector.extract_strided_slice %72 {offsets = [0, 32], sizes = [8, 32], strides = [1, 1]} : vector<8x96xf32> to vector<8x32xf32>
    %83 = arith.addf %81, %82 : vector<8x32xf32>
    %84 = arith.negf %83 : vector<8x32xf32>
    %85 = math.exp %84 : vector<8x32xf32>
    %cst_19 = arith.constant 1.000000e+00 : f32
    %86 = vector.broadcast %cst_19 : f32 to vector<8x32xf32>
    %87 = arith.addf %86, %85 : vector<8x32xf32>
    %88 = arith.divf %86, %87 : vector<8x32xf32>
    %89 = vector.extract_strided_slice %71 {offsets = [0, 64], sizes = [8, 32], strides = [1, 1]} : vector<8x96xf32> to vector<8x32xf32>
    %90 = vector.extract_strided_slice %72 {offsets = [0, 64], sizes = [8, 32], strides = [1, 1]} : vector<8x96xf32> to vector<8x32xf32>
    %91 = arith.addf %90, %11 : vector<8x32xf32>
    %92 = arith.mulf %80, %91 : vector<8x32xf32>
    %93 = arith.addf %89, %92 : vector<8x32xf32>
    %94 = math.tanh %93 : vector<8x32xf32>
    %cst_20 = arith.constant 1.000000e+00 : f32
    %95 = vector.broadcast %cst_20 : f32 to vector<8x32xf32>
    %96 = arith.subf %95, %88 : vector<8x32xf32>
    %97 = arith.mulf %96, %94 : vector<8x32xf32>
    %98 = arith.mulf %88, %70 : vector<8x32xf32>
    %99 = arith.addf %97, %98 : vector<8x32xf32>
    %100 = vector.extract_strided_slice %9 {offsets = [24, 0], sizes = [8, 96], strides = [1, 1]} : vector<64x96xf32> to vector<8x96xf32>
    %cst_21 = arith.constant dense<0.000000e+00> : vector<8x96xf32>
    %101 = tpu.matmul %99, %1, %cst_21 {dimension_numbers = #tpu.dot_dimension_numbers<[1], [0], [0], [1], [0, 0, 1, 1], [], []>} : vector<8x32xf32>, vector<32x96xf32>, vector<8x96xf32> -> vector<8x96xf32>
    %102 = vector.extract_strided_slice %100 {offsets = [0, 0], sizes = [8, 32], strides = [1, 1]} : vector<8x96xf32> to vector<8x32xf32>
    %103 = vector.extract_strided_slice %101 {offsets = [0, 0], sizes = [8, 32], strides = [1, 1]} : vector<8x96xf32> to vector<8x32xf32>
    %104 = arith.addf %102, %103 : vector<8x32xf32>
    %105 = arith.negf %104 : vector<8x32xf32>
    %106 = math.exp %105 : vector<8x32xf32>
    %cst_22 = arith.constant 1.000000e+00 : f32
    %107 = vector.broadcast %cst_22 : f32 to vector<8x32xf32>
    %108 = arith.addf %107, %106 : vector<8x32xf32>
    %109 = arith.divf %107, %108 : vector<8x32xf32>
    %110 = vector.extract_strided_slice %100 {offsets = [0, 32], sizes = [8, 32], strides = [1, 1]} : vector<8x96xf32> to vector<8x32xf32>
    %111 = vector.extract_strided_slice %101 {offsets = [0, 32], sizes = [8, 32], strides = [1, 1]} : vector<8x96xf32> to vector<8x32xf32>
    %112 = arith.addf %110, %111 : vector<8x32xf32>
    %113 = arith.negf %112 : vector<8x32xf32>
    %114 = math.exp %113 : vector<8x32xf32>
    %cst_23 = arith.constant 1.000000e+00 : f32
    %115 = vector.broadcast %cst_23 : f32 to vector<8x32xf32>
    %116 = arith.addf %115, %114 : vector<8x32xf32>
    %117 = arith.divf %115, %116 : vector<8x32xf32>
    %118 = vector.extract_strided_slice %100 {offsets = [0, 64], sizes = [8, 32], strides = [1, 1]} : vector<8x96xf32> to vector<8x32xf32>
    %119 = vector.extract_strided_slice %101 {offsets = [0, 64], sizes = [8, 32], strides = [1, 1]} : vector<8x96xf32> to vector<8x32xf32>
    %120 = arith.addf %119, %11 : vector<8x32xf32>
    %121 = arith.mulf %109, %120 : vector<8x32xf32>
    %122 = arith.addf %118, %121 : vector<8x32xf32>
    %123 = math.tanh %122 : vector<8x32xf32>
    %cst_24 = arith.constant 1.000000e+00 : f32
    %124 = vector.broadcast %cst_24 : f32 to vector<8x32xf32>
    %125 = arith.subf %124, %117 : vector<8x32xf32>
    %126 = arith.mulf %125, %123 : vector<8x32xf32>
    %127 = arith.mulf %117, %99 : vector<8x32xf32>
    %128 = arith.addf %126, %127 : vector<8x32xf32>
    %129 = vector.extract_strided_slice %9 {offsets = [32, 0], sizes = [8, 96], strides = [1, 1]} : vector<64x96xf32> to vector<8x96xf32>
    %cst_25 = arith.constant dense<0.000000e+00> : vector<8x96xf32>
    %130 = tpu.matmul %128, %1, %cst_25 {dimension_numbers = #tpu.dot_dimension_numbers<[1], [0], [0], [1], [0, 0, 1, 1], [], []>} : vector<8x32xf32>, vector<32x96xf32>, vector<8x96xf32> -> vector<8x96xf32>
    %131 = vector.extract_strided_slice %129 {offsets = [0, 0], sizes = [8, 32], strides = [1, 1]} : vector<8x96xf32> to vector<8x32xf32>
    %132 = vector.extract_strided_slice %130 {offsets = [0, 0], sizes = [8, 32], strides = [1, 1]} : vector<8x96xf32> to vector<8x32xf32>
    %133 = arith.addf %131, %132 : vector<8x32xf32>
    %134 = arith.negf %133 : vector<8x32xf32>
    %135 = math.exp %134 : vector<8x32xf32>
    %cst_26 = arith.constant 1.000000e+00 : f32
    %136 = vector.broadcast %cst_26 : f32 to vector<8x32xf32>
    %137 = arith.addf %136, %135 : vector<8x32xf32>
    %138 = arith.divf %136, %137 : vector<8x32xf32>
    %139 = vector.extract_strided_slice %129 {offsets = [0, 32], sizes = [8, 32], strides = [1, 1]} : vector<8x96xf32> to vector<8x32xf32>
    %140 = vector.extract_strided_slice %130 {offsets = [0, 32], sizes = [8, 32], strides = [1, 1]} : vector<8x96xf32> to vector<8x32xf32>
    %141 = arith.addf %139, %140 : vector<8x32xf32>
    %142 = arith.negf %141 : vector<8x32xf32>
    %143 = math.exp %142 : vector<8x32xf32>
    %cst_27 = arith.constant 1.000000e+00 : f32
    %144 = vector.broadcast %cst_27 : f32 to vector<8x32xf32>
    %145 = arith.addf %144, %143 : vector<8x32xf32>
    %146 = arith.divf %144, %145 : vector<8x32xf32>
    %147 = vector.extract_strided_slice %129 {offsets = [0, 64], sizes = [8, 32], strides = [1, 1]} : vector<8x96xf32> to vector<8x32xf32>
    %148 = vector.extract_strided_slice %130 {offsets = [0, 64], sizes = [8, 32], strides = [1, 1]} : vector<8x96xf32> to vector<8x32xf32>
    %149 = arith.addf %148, %11 : vector<8x32xf32>
    %150 = arith.mulf %138, %149 : vector<8x32xf32>
    %151 = arith.addf %147, %150 : vector<8x32xf32>
    %152 = math.tanh %151 : vector<8x32xf32>
    %cst_28 = arith.constant 1.000000e+00 : f32
    %153 = vector.broadcast %cst_28 : f32 to vector<8x32xf32>
    %154 = arith.subf %153, %146 : vector<8x32xf32>
    %155 = arith.mulf %154, %152 : vector<8x32xf32>
    %156 = arith.mulf %146, %128 : vector<8x32xf32>
    %157 = arith.addf %155, %156 : vector<8x32xf32>
    %158 = vector.extract_strided_slice %9 {offsets = [40, 0], sizes = [8, 96], strides = [1, 1]} : vector<64x96xf32> to vector<8x96xf32>
    %cst_29 = arith.constant dense<0.000000e+00> : vector<8x96xf32>
    %159 = tpu.matmul %157, %1, %cst_29 {dimension_numbers = #tpu.dot_dimension_numbers<[1], [0], [0], [1], [0, 0, 1, 1], [], []>} : vector<8x32xf32>, vector<32x96xf32>, vector<8x96xf32> -> vector<8x96xf32>
    %160 = vector.extract_strided_slice %158 {offsets = [0, 0], sizes = [8, 32], strides = [1, 1]} : vector<8x96xf32> to vector<8x32xf32>
    %161 = vector.extract_strided_slice %159 {offsets = [0, 0], sizes = [8, 32], strides = [1, 1]} : vector<8x96xf32> to vector<8x32xf32>
    %162 = arith.addf %160, %161 : vector<8x32xf32>
    %163 = arith.negf %162 : vector<8x32xf32>
    %164 = math.exp %163 : vector<8x32xf32>
    %cst_30 = arith.constant 1.000000e+00 : f32
    %165 = vector.broadcast %cst_30 : f32 to vector<8x32xf32>
    %166 = arith.addf %165, %164 : vector<8x32xf32>
    %167 = arith.divf %165, %166 : vector<8x32xf32>
    %168 = vector.extract_strided_slice %158 {offsets = [0, 32], sizes = [8, 32], strides = [1, 1]} : vector<8x96xf32> to vector<8x32xf32>
    %169 = vector.extract_strided_slice %159 {offsets = [0, 32], sizes = [8, 32], strides = [1, 1]} : vector<8x96xf32> to vector<8x32xf32>
    %170 = arith.addf %168, %169 : vector<8x32xf32>
    %171 = arith.negf %170 : vector<8x32xf32>
    %172 = math.exp %171 : vector<8x32xf32>
    %cst_31 = arith.constant 1.000000e+00 : f32
    %173 = vector.broadcast %cst_31 : f32 to vector<8x32xf32>
    %174 = arith.addf %173, %172 : vector<8x32xf32>
    %175 = arith.divf %173, %174 : vector<8x32xf32>
    %176 = vector.extract_strided_slice %158 {offsets = [0, 64], sizes = [8, 32], strides = [1, 1]} : vector<8x96xf32> to vector<8x32xf32>
    %177 = vector.extract_strided_slice %159 {offsets = [0, 64], sizes = [8, 32], strides = [1, 1]} : vector<8x96xf32> to vector<8x32xf32>
    %178 = arith.addf %177, %11 : vector<8x32xf32>
    %179 = arith.mulf %167, %178 : vector<8x32xf32>
    %180 = arith.addf %176, %179 : vector<8x32xf32>
    %181 = math.tanh %180 : vector<8x32xf32>
    %cst_32 = arith.constant 1.000000e+00 : f32
    %182 = vector.broadcast %cst_32 : f32 to vector<8x32xf32>
    %183 = arith.subf %182, %175 : vector<8x32xf32>
    %184 = arith.mulf %183, %181 : vector<8x32xf32>
    %185 = arith.mulf %175, %157 : vector<8x32xf32>
    %186 = arith.addf %184, %185 : vector<8x32xf32>
    %187 = vector.extract_strided_slice %9 {offsets = [48, 0], sizes = [8, 96], strides = [1, 1]} : vector<64x96xf32> to vector<8x96xf32>
    %cst_33 = arith.constant dense<0.000000e+00> : vector<8x96xf32>
    %188 = tpu.matmul %186, %1, %cst_33 {dimension_numbers = #tpu.dot_dimension_numbers<[1], [0], [0], [1], [0, 0, 1, 1], [], []>} : vector<8x32xf32>, vector<32x96xf32>, vector<8x96xf32> -> vector<8x96xf32>
    %189 = vector.extract_strided_slice %187 {offsets = [0, 0], sizes = [8, 32], strides = [1, 1]} : vector<8x96xf32> to vector<8x32xf32>
    %190 = vector.extract_strided_slice %188 {offsets = [0, 0], sizes = [8, 32], strides = [1, 1]} : vector<8x96xf32> to vector<8x32xf32>
    %191 = arith.addf %189, %190 : vector<8x32xf32>
    %192 = arith.negf %191 : vector<8x32xf32>
    %193 = math.exp %192 : vector<8x32xf32>
    %cst_34 = arith.constant 1.000000e+00 : f32
    %194 = vector.broadcast %cst_34 : f32 to vector<8x32xf32>
    %195 = arith.addf %194, %193 : vector<8x32xf32>
    %196 = arith.divf %194, %195 : vector<8x32xf32>
    %197 = vector.extract_strided_slice %187 {offsets = [0, 32], sizes = [8, 32], strides = [1, 1]} : vector<8x96xf32> to vector<8x32xf32>
    %198 = vector.extract_strided_slice %188 {offsets = [0, 32], sizes = [8, 32], strides = [1, 1]} : vector<8x96xf32> to vector<8x32xf32>
    %199 = arith.addf %197, %198 : vector<8x32xf32>
    %200 = arith.negf %199 : vector<8x32xf32>
    %201 = math.exp %200 : vector<8x32xf32>
    %cst_35 = arith.constant 1.000000e+00 : f32
    %202 = vector.broadcast %cst_35 : f32 to vector<8x32xf32>
    %203 = arith.addf %202, %201 : vector<8x32xf32>
    %204 = arith.divf %202, %203 : vector<8x32xf32>
    %205 = vector.extract_strided_slice %187 {offsets = [0, 64], sizes = [8, 32], strides = [1, 1]} : vector<8x96xf32> to vector<8x32xf32>
    %206 = vector.extract_strided_slice %188 {offsets = [0, 64], sizes = [8, 32], strides = [1, 1]} : vector<8x96xf32> to vector<8x32xf32>
    %207 = arith.addf %206, %11 : vector<8x32xf32>
    %208 = arith.mulf %196, %207 : vector<8x32xf32>
    %209 = arith.addf %205, %208 : vector<8x32xf32>
    %210 = math.tanh %209 : vector<8x32xf32>
    %cst_36 = arith.constant 1.000000e+00 : f32
    %211 = vector.broadcast %cst_36 : f32 to vector<8x32xf32>
    %212 = arith.subf %211, %204 : vector<8x32xf32>
    %213 = arith.mulf %212, %210 : vector<8x32xf32>
    %214 = arith.mulf %204, %186 : vector<8x32xf32>
    %215 = arith.addf %213, %214 : vector<8x32xf32>
    %216 = vector.extract_strided_slice %9 {offsets = [56, 0], sizes = [8, 96], strides = [1, 1]} : vector<64x96xf32> to vector<8x96xf32>
    %cst_37 = arith.constant dense<0.000000e+00> : vector<8x96xf32>
    %217 = tpu.matmul %215, %1, %cst_37 {dimension_numbers = #tpu.dot_dimension_numbers<[1], [0], [0], [1], [0, 0, 1, 1], [], []>} : vector<8x32xf32>, vector<32x96xf32>, vector<8x96xf32> -> vector<8x96xf32>
    %218 = vector.extract_strided_slice %216 {offsets = [0, 0], sizes = [8, 32], strides = [1, 1]} : vector<8x96xf32> to vector<8x32xf32>
    %219 = vector.extract_strided_slice %217 {offsets = [0, 0], sizes = [8, 32], strides = [1, 1]} : vector<8x96xf32> to vector<8x32xf32>
    %220 = arith.addf %218, %219 : vector<8x32xf32>
    %221 = arith.negf %220 : vector<8x32xf32>
    %222 = math.exp %221 : vector<8x32xf32>
    %cst_38 = arith.constant 1.000000e+00 : f32
    %223 = vector.broadcast %cst_38 : f32 to vector<8x32xf32>
    %224 = arith.addf %223, %222 : vector<8x32xf32>
    %225 = arith.divf %223, %224 : vector<8x32xf32>
    %226 = vector.extract_strided_slice %216 {offsets = [0, 32], sizes = [8, 32], strides = [1, 1]} : vector<8x96xf32> to vector<8x32xf32>
    %227 = vector.extract_strided_slice %217 {offsets = [0, 32], sizes = [8, 32], strides = [1, 1]} : vector<8x96xf32> to vector<8x32xf32>
    %228 = arith.addf %226, %227 : vector<8x32xf32>
    %229 = arith.negf %228 : vector<8x32xf32>
    %230 = math.exp %229 : vector<8x32xf32>
    %cst_39 = arith.constant 1.000000e+00 : f32
    %231 = vector.broadcast %cst_39 : f32 to vector<8x32xf32>
    %232 = arith.addf %231, %230 : vector<8x32xf32>
    %233 = arith.divf %231, %232 : vector<8x32xf32>
    %234 = vector.extract_strided_slice %216 {offsets = [0, 64], sizes = [8, 32], strides = [1, 1]} : vector<8x96xf32> to vector<8x32xf32>
    %235 = vector.extract_strided_slice %217 {offsets = [0, 64], sizes = [8, 32], strides = [1, 1]} : vector<8x96xf32> to vector<8x32xf32>
    %236 = arith.addf %235, %11 : vector<8x32xf32>
    %237 = arith.mulf %225, %236 : vector<8x32xf32>
    %238 = arith.addf %234, %237 : vector<8x32xf32>
    %239 = math.tanh %238 : vector<8x32xf32>
    %cst_40 = arith.constant 1.000000e+00 : f32
    %240 = vector.broadcast %cst_40 : f32 to vector<8x32xf32>
    %241 = arith.subf %240, %233 : vector<8x32xf32>
    %242 = arith.mulf %241, %239 : vector<8x32xf32>
    %243 = arith.mulf %233, %215 : vector<8x32xf32>
    %244 = arith.addf %242, %243 : vector<8x32xf32>
    %245 = tpu.concatenate %41, %70, %99, %128, %157, %186, %215, %244 in 0 : vector<8x32xf32>, vector<8x32xf32>, vector<8x32xf32>, vector<8x32xf32>, vector<8x32xf32>, vector<8x32xf32>, vector<8x32xf32>, vector<8x32xf32> -> vector<64x32xf32>
    %cst_41 = arith.constant dense<0.000000e+00> : vector<64x8xf32>
    %246 = tpu.matmul %245, %2, %cst_41 {dimension_numbers = #tpu.dot_dimension_numbers<[1], [0], [0], [1], [0, 0, 1, 1], [], []>} : vector<64x32xf32>, vector<32x8xf32>, vector<64x8xf32> -> vector<64x8xf32>
    %247 = vector.broadcast %5 : vector<1x8xf32> to vector<64x8xf32>
    %248 = arith.addf %246, %247 : vector<64x8xf32>
    %c0_42 = arith.constant 0 : index
    %c0_43 = arith.constant 0 : index
    %249 = vector.load %arg3[%c0_42, %c0_43] : memref<64x8xf32, #tpu.memory_space<vmem>>, vector<64x8xf32>
    tpu.vector_store %arg3[%c0_42, %c0_43], %248 {strides = array<i32>} : memref<64x8xf32, #tpu.memory_space<vmem>>, vector<64x8xf32>,
    return
  }
  func.func @transform_0(%arg0: i32) -> (i32, i32) {
    %c0_i32 = arith.constant 0 : i32
    %c0_i32_0 = arith.constant 0 : i32
    %c0_i32_1 = arith.constant 0 : i32
    return %c0_i32, %c0_i32_0 : i32, i32
  }
  func.func @transform_1(%arg0: i32) -> (i32, i32) {
    %c0_i32 = arith.constant 0 : i32
    %c0_i32_0 = arith.constant 0 : i32
    %c0_i32_1 = arith.constant 0 : i32
    return %c0_i32, %c0_i32_0 : i32, i32
  }
  func.func @transform_2(%arg0: i32) -> (i32, i32) {
    %c0_i32 = arith.constant 0 : i32
    %c0_i32_0 = arith.constant 0 : i32
    %c0_i32_1 = arith.constant 0 : i32
    return %c0_i32, %c0_i32_0 : i32, i32
  }
}

</mosaic_0001>

<llo_original>
// kernel: encoder_forward.1
$region0: #{encoder_forward.1}
  #allocation0 [shape = 'u32[]', space=smem, size = 0x4, offset = 0x4, fixed_abs, tag = 'smem constant byte address 0x4 - core index']
  #allocation1 [shape = 'u32[144,128]{1,0:T(1,128)}', space=vmem, size = 0x12000, scoped, tag = 'internal scratch']
  %s0 = inlined_call_operand.vmem [shape: f32[64,3], index: 0, kind: input, shape index: {}]
  %s1 = inlined_call_operand.vmem [shape: f32[80,128], index: 1, kind: input, shape index: {}]
  %s2 = inlined_call_operand.vmem [shape: f32[64,8], index: 2, kind: output, shape index: {}]
  %s3 = sld [smem:[#allocation0]]
  $region18: #{encoder_forward.1} parent=0
    _
  %s5 = ssub.s32 1, %s3
  %s6 = scalar_select 0, %s5, %s3
  // Predicated region
  $region2: #{encoder_forward.1} parent=0 // pred_check
    _
  $region3: #{encoder_forward.1} parent=0 // pred_check_branch
    %8 = sbr.rel (0) target = $region5
  $region4: #{encoder_forward.1} parent=0 // pred_region
    _
  $region5: #{encoder_forward.1} parent=0 // pred_fallthru
    _
  // Predicated region
  $region6: #{encoder_forward.1} parent=0 // pred_check
    _
  $region7: #{encoder_forward.1} parent=0 // pred_check_branch
    %10 = sbr.rel (0) target = $region9
  $region8: #{encoder_forward.1} parent=0 // pred_region
    _
  $region9: #{encoder_forward.1} parent=0 // pred_fallthru
    _
  %v11 = vld [vmem:[%s1] sm:$0x7]
  %v12 = vld [vmem:[%s1 + $0x8] sm:$0xff]
  %v13 = vld [vmem:[%s1 + $0x10] sm:$0xff]
  %v14 = vld [vmem:[%s1 + $0x18] sm:$0xff]
  %v15 = vld [vmem:[%s1 + $0x20] sm:$0xff]
  %v16 = vld [vmem:[%s1 + $0x28] sm:$0xff]
  %v17 = vld [vmem:[%s1 + $0x30] sm:$0xff]
  %v18 = vld [vmem:[%s1 + $0x38] sm:$0xff]
  %v19 = vld [vmem:[%s1 + $0x40] sm:$0xff]
  %v20 = vld [vmem:[%s1 + $0x48] sm:$0x1]
  %v21 = vld [vmem:[%s1 + $0x49] sm:$0x1]
  %v22 = vld [vmem:[%s1 + $0x4a] sm:$0x1]
  %v23 = vld [vmem:[%s0] sm:$0xff]
  %v24 = vld [vmem:[%s0 + $0x8] sm:$0xff]
  %v25 = vld [vmem:[%s0 + $0x10] sm:$0xff]
  %v26 = vld [vmem:[%s0 + $0x18] sm:$0xff]
  %v27 = vld [vmem:[%s0 + $0x20] sm:$0xff]
  %v28 = vld [vmem:[%s0 + $0x28] sm:$0xff]
  %v29 = vld [vmem:[%s0 + $0x30] sm:$0xff]
  %v30 = vld [vmem:[%s0 + $0x38] sm:$0xff]
  %v31 = vlaneseq
  %v32 = vshrl.u32 %v31, 7
  %v33 = vsub.s32 0, %v32
  %v34 = vrot.slane %v20, %v33
  %vm35 = vcmask 23552
  %v37 = vsel %vm35, %v23, 0
  %v40 = vsel %vm35, %v24, 0
  %v43 = vsel %vm35, %v25, 0
  %v46 = vsel %vm35, %v26, 0
  %v49 = vsel %vm35, %v27, 0
  %v52 = vsel %vm35, %v28, 0
  %v55 = vsel %vm35, %v29, 0
  %v58 = vsel %vm35, %v30, 0
  %vm60 = vcmask 1042432
  %v62 = vsel %vm60, %v11, 0
  %64 = vmatprep.subr.mxu0 0.0
  %65 = vmatpush1.msra.mxu0 0.0
  %66 = vmatprep.subr.mxu0 0.0
  %67 = vmatpush1.msra.mxu0 0.0
  %68 = vmatprep.subr.mxu0 0.0
  %69 = vmatpush1.msra.mxu0 0.0
  %70 = vmatprep.subr.mxu0 0.0
  %71 = vmatpush1.msra.mxu0 0.0
  %72 = vmatprep.subr.mxu0 0.0
  %73 = vmatpush1.msra.mxu0 0.0
  %74 = vmatprep.subr.mxu0 0.0
  %75 = vmatpush1.msra.mxu0 0.0
  %76 = vmatprep.subr.mxu0 0.0
  %77 = vmatpush1.msra.mxu0 0.0
  %78 = vmatprep.subr.mxu0 0.0
  %79 = vmatpush1.msra.mxu0 0.0
  %80 = vmatprep.subr.mxu0 0.0
  %81 = vmatpush1.msra.mxu0 0.0
  %82 = vmatprep.subr.mxu0 0.0
  %83 = vmatpush1.msra.mxu0 0.0
  %84 = vmatprep.subr.mxu0 0.0
  %85 = vmatpush1.msra.mxu0 0.0
  %86 = vmatprep.subr.mxu0 0.0
  %87 = vmatpush1.msra.mxu0 0.0
  %88 = vmatprep.subr.mxu0 0.0
  %89 = vmatpush1.msra.mxu0 0.0
  %90 = vmatprep.subr.mxu0 0.0
  %91 = vmatpush1.msra.mxu0 0.0
  %92 = vmatprep.subr.mxu0 0.0
  %93 = vmatpush1.msra.mxu0 0.0
  %94 = vmatprep.subr.mxu0 0.0
  %95 = vmatpush1.msra.mxu0 %v62
  %96 = vmatprep.subr.mxu0 0.0
  %97 = vmatpush2.msra.mxu0 0.0
  %98 = vmatprep.subr.mxu0 0.0
  %99 = vmatpush2.msra.mxu0 0.0
  %100 = vmatprep.subr.mxu0 0.0
  %101 = vmatpush2.msra.mxu0 0.0
  %102 = vmatprep.subr.mxu0 0.0
  %103 = vmatpush2.msra.mxu0 0.0
  %104 = vmatprep.subr.mxu0 0.0
  %105 = vmatpush2.msra.mxu0 0.0
  %106 = vmatprep.subr.mxu0 0.0
  %107 = vmatpush2.msra.mxu0 0.0
  %108 = vmatprep.subr.mxu0 0.0
  %109 = vmatpush2.msra.mxu0 0.0
  %110 = vmatprep.subr.mxu0 0.0
  %111 = vmatpush2.msra.mxu0 0.0
  %112 = vmatprep.subr.mxu0 0.0
  %113 = vmatpush2.msra.mxu0 0.0
  %114 = vmatprep.subr.mxu0 0.0
  %115 = vmatpush2.msra.mxu0 0.0
  %116 = vmatprep.subr.mxu0 0.0
  %117 = vmatpush2.msra.mxu0 0.0
  %118 = vmatprep.subr.mxu0 0.0
  %119 = vmatpush2.msra.mxu0 0.0
  %120 = vmatprep.subr.mxu0 0.0
  %121 = vmatpush2.msra.mxu0 0.0
  %122 = vmatprep.subr.mxu0 0.0
  %123 = vmatpush2.msra.mxu0 0.0
  %124 = vmatprep.subr.mxu0 0.0
  %125 = vmatpush2.msra.mxu0 0.0
  %126 = vmatprep.subr.mxu0 0.0
  %127 = vmatpush2.msra.mxu0 0.0
  %128 = vmatprep.mubr.f32.mxu0 0.0
  %129 = vmatmul.mubr.f32.gmra.mxu0 %v37
  %v130 = vpop.f32.mrf.mxu0
  %v131 = vadd.f32 %v34, %v130
  %v132 = vpop.f32.mrf.mxu0
  %133 = vmatprep.mubr.f32.mxu0 0.0
  %134 = vmatmul.mubr.f32.gmra.mxu0 %v40
  %v135 = vpop.f32.mrf.mxu0
  %v136 = vadd.f32 %v34, %v135
  %v137 = vpop.f32.mrf.mxu0
  %138 = vmatprep.mubr.f32.mxu0 0.0
  %139 = vmatmul.mubr.f32.gmra.mxu0 %v43
  %v140 = vpop.f32.mrf.mxu0
  %v141 = vadd.f32 %v34, %v140
  %v142 = vpop.f32.mrf.mxu0
  %143 = vmatprep.mubr.f32.mxu0 0.0
  %144 = vmatmul.mubr.f32.gmra.mxu0 %v46
  %v145 = vpop.f32.mrf.mxu0
  %v146 = vadd.f32 %v34, %v145
  %v147 = vpop.f32.mrf.mxu0
  %148 = vmatprep.mubr.f32.mxu0 0.0
  %149 = vmatmul.mubr.f32.gmra.mxu0 %v49
  %v150 = vpop.f32.mrf.mxu0
  %v151 = vadd.f32 %v34, %v150
  %v152 = vpop.f32.mrf.mxu0
  %153 = vmatprep.mubr.f32.mxu0 0.0
  %154 = vmatmul.mubr.f32.gmra.mxu0 %v52
  %v155 = vpop.f32.mrf.mxu0
  %v156 = vadd.f32 %v34, %v155
  %v157 = vpop.f32.mrf.mxu0
  %158 = vmatprep.mubr.f32.mxu0 0.0
  %159 = vmatmul.mubr.f32.gmra.mxu0 %v55
  %v160 = vpop.f32.mrf.mxu0
  %v161 = vadd.f32 %v34, %v160
  %v162 = vpop.f32.mrf.mxu0
  %163 = vmatprep.mubr.f32.mxu0 0.0
  %164 = vmatmul.mubr.f32.gmra.mxu0 %v58
  %v165 = vpop.f32.mrf.mxu0
  %v166 = vadd.f32 %v34, %v165
  %v167 = vpop.f32.mrf.mxu0
  %168 = vdwg.mxu0
  %v169 = vlaneseq
  %v170 = vshrl.u32 %v169, 7
  %v171 = vsub.s32 0, %v170
  %v172 = vrot.slane %v21, %v171
  %vm173 = vcmask 261120
  %v175 = vsel %vm173, 0.0, 0
  %177 = vmatprep.subr.mxu0 0.0
  %178 = vmatpush1.msra.mxu0 0.0
  %179 = vmatprep.subr.mxu0 0.0
  %180 = vmatpush1.msra.mxu0 0.0
  %181 = vmatprep.subr.mxu0 0.0
  %182 = vmatpush1.msra.mxu0 0.0
  %183 = vmatprep.subr.mxu0 0.0
  %184 = vmatpush1.msra.mxu0 0.0
  %185 = vmatprep.subr.mxu0 0.0
  %186 = vmatpush1.msra.mxu0 0.0
  %187 = vmatprep.subr.mxu0 0.0
  %188 = vmatpush1.msra.mxu0 0.0
  %189 = vmatprep.subr.mxu0 0.0
  %190 = vmatpush1.msra.mxu0 0.0
  %191 = vmatprep.subr.mxu0 0.0
  %192 = vmatpush1.msra.mxu0 0.0
  %193 = vmatprep.subr.mxu0 0.0
  %194 = vmatpush1.msra.mxu0 0.0
  %195 = vmatprep.subr.mxu0 0.0
  %196 = vmatpush1.msra.mxu0 0.0
  %197 = vmatprep.subr.mxu0 0.0
  %198 = vmatpush1.msra.mxu0 0.0
  %199 = vmatprep.subr.mxu0 0.0
  %200 = vmatpush1.msra.mxu0 0.0
  %201 = vmatprep.subr.mxu0 0.0
  %202 = vmatpush1.msra.mxu0 %v15
  %203 = vmatprep.subr.mxu0 0.0
  %204 = vmatpush1.msra.mxu0 %v14
  %205 = vmatprep.subr.mxu0 0.0
  %206 = vmatpush1.msra.mxu0 %v13
  %207 = vmatprep.subr.mxu0 0.0
  %208 = vmatpush1.msra.mxu0 %v12
  %209 = vmatprep.subr.mxu0 0.0
  %210 = vmatpush2.msra.mxu0 0.0
  %211 = vmatprep.subr.mxu0 0.0
  %212 = vmatpush2.msra.mxu0 0.0
  %213 = vmatprep.subr.mxu0 0.0
  %214 = vmatpush2.msra.mxu0 0.0
  %215 = vmatprep.subr.mxu0 0.0
  %216 = vmatpush2.msra.mxu0 0.0
  %217 = vmatprep.subr.mxu0 0.0
  %218 = vmatpush2.msra.mxu0 0.0
  %219 = vmatprep.subr.mxu0 0.0
  %220 = vmatpush2.msra.mxu0 0.0
  %221 = vmatprep.subr.mxu0 0.0
  %222 = vmatpush2.msra.mxu0 0.0
  %223 = vmatprep.subr.mxu0 0.0
  %224 = vmatpush2.msra.mxu0 0.0
  %225 = vmatprep.subr.mxu0 0.0
  %226 = vmatpush2.msra.mxu0 0.0
  %227 = vmatprep.subr.mxu0 0.0
  %228 = vmatpush2.msra.mxu0 0.0
  %229 = vmatprep.subr.mxu0 0.0
  %230 = vmatpush2.msra.mxu0 0.0
  %231 = vmatprep.subr.mxu0 0.0
  %232 = vmatpush2.msra.mxu0 0.0
  %233 = vmatprep.subr.mxu0 0.0
  %234 = vmatpush2.msra.mxu0 0.0
  %235 = vmatprep.subr.mxu0 0.0
  %236 = vmatpush2.msra.mxu0 0.0
  %237 = vmatprep.subr.mxu0 0.0
  %238 = vmatpush2.msra.mxu0 0.0
  %239 = vmatprep.subr.mxu0 0.0
  %240 = vmatpush2.msra.mxu0 0.0
  %241 = vmatprep.mubr.f32.mxu0 0.0
  %242 = vmatmul.mubr.f32.gmra.mxu0 %v175
  %v243 = vpop.f32.mrf.mxu0
  %v244 = vadd.f32 0.0, %v243
  %v245 = vpop.f32.mrf.mxu0
  %246 = vdwg.mxu0
  %v247 = vadd.f32 %v131, %v244
  %v248 = vxor.u32 %v247, 2147483648
  %v249 = vmul.f32 %v248, 1.442695
  %v250 = vpow.pop %v249
  %v251 = vadd.f32 %v250, 1.0
  %v252 = vrcp.pop %v251
  %v253 = vmul.f32 1.0, %v252
  %255 = vrot.lane.b32.xlu0 %v172, 64
  %v256 = vpop.permute.xlu0 %255
  %v258 = vadd.f32 %v244, %v256
  %260 = vrot.lane.b32.xlu0 %v258, 64
  %v261 = vpop.permute.xlu0 %260
  %v263 = vmul.f32 %v253, %v261
  %265 = vrot.lane.b32.xlu0 %v263, 64
  %v266 = vpop.permute.xlu0 %265
  %v268 = vadd.f32 %v131, %v266
  %v269 = vtanh.pop %v268
  %v270 = vsub.f32 1.0, %v253
  %272 = vrot.lane.b32.xlu0 %v269, 96
  %v273 = vpop.permute.xlu0 %272
  %v275 = vmul.f32 %v270, %v273
  %v276 = vmul.f32 %v253, 0.0
  %v277 = vadd.f32 %v275, %v276
  %279 = vrot.lane.b32.xlu0 %v277, 96
  %v280 = vpop.permute.xlu0 %279
  %v281 = vsel %vm173, %v280, 0
  %283 = vmatprep.subr.mxu0 0.0
  %284 = vmatpush1.msra.mxu0 0.0
  %285 = vmatprep.subr.mxu0 0.0
  %286 = vmatpush1.msra.mxu0 0.0
  %287 = vmatprep.subr.mxu0 0.0
  %288 = vmatpush1.msra.mxu0 0.0
  %289 = vmatprep.subr.mxu0 0.0
  %290 = vmatpush1.msra.mxu0 0.0
  %291 = vmatprep.subr.mxu0 0.0
  %292 = vmatpush1.msra.mxu0 0.0
  %293 = vmatprep.subr.mxu0 0.0
  %294 = vmatpush1.msra.mxu0 0.0
  %295 = vmatprep.subr.mxu0 0.0
  %296 = vmatpush1.msra.mxu0 0.0
  %297 = vmatprep.subr.mxu0 0.0
  %298 = vmatpush1.msra.mxu0 0.0
  %299 = vmatprep.subr.mxu0 0.0
  %300 = vmatpush1.msra.mxu0 0.0
  %301 = vmatprep.subr.mxu0 0.0
  %302 = vmatpush1.msra.mxu0 0.0
  %303 = vmatprep.subr.mxu0 0.0
  %304 = vmatpush1.msra.mxu0 0.0
  %305 = vmatprep.subr.mxu0 0.0
  %306 = vmatpush1.msra.mxu0 0.0
  %307 = vmatprep.subr.mxu0 0.0
  %308 = vmatpush1.msra.mxu0 %v15
  %309 = vmatprep.subr.mxu0 0.0
  %310 = vmatpush1.msra.mxu0 %v14
  %311 = vmatprep.subr.mxu0 0.0
  %312 = vmatpush1.msra.mxu0 %v13
  %313 = vmatprep.subr.mxu0 0.0
  %314 = vmatpush1.msra.mxu0 %v12
  %315 = vmatprep.subr.mxu0 0.0
  %316 = vmatpush2.msra.mxu0 0.0
  %317 = vmatprep.subr.mxu0 0.0
  %318 = vmatpush2.msra.mxu0 0.0
  %319 = vmatprep.subr.mxu0 0.0
  %320 = vmatpush2.msra.mxu0 0.0
  %321 = vmatprep.subr.mxu0 0.0
  %322 = vmatpush2.msra.mxu0 0.0
  %323 = vmatprep.subr.mxu0 0.0
  %324 = vmatpush2.msra.mxu0 0.0
  %325 = vmatprep.subr.mxu0 0.0
  %326 = vmatpush2.msra.mxu0 0.0
  %327 = vmatprep.subr.mxu0 0.0
  %328 = vmatpush2.msra.mxu0 0.0
  %329 = vmatprep.subr.mxu0 0.0
  %330 = vmatpush2.msra.mxu0 0.0
  %331 = vmatprep.subr.mxu0 0.0
  %332 = vmatpush2.msra.mxu0 0.0
  %333 = vmatprep.subr.mxu0 0.0
  %334 = vmatpush2.msra.mxu0 0.0
  %335 = vmatprep.subr.mxu0 0.0
  %336 = vmatpush2.msra.mxu0 0.0
  %337 = vmatprep.subr.mxu0 0.0
  %338 = vmatpush2.msra.mxu0 0.0
  %339 = vmatprep.subr.mxu0 0.0
  %340 = vmatpush2.msra.mxu0 0.0
  %341 = vmatprep.subr.mxu0 0.0
  %342 = vmatpush2.msra.mxu0 0.0
  %343 = vmatprep.subr.mxu0 0.0
  %344 = vmatpush2.msra.mxu0 0.0
  %345 = vmatprep.subr.mxu0 0.0
  %346 = vmatpush2.msra.mxu0 0.0
  %347 = vmatprep.mubr.f32.mxu0 0.0
  %348 = vmatmul.mubr.f32.gmra.mxu0 %v281
  %v349 = vpop.f32.mrf.mxu0
  %v350 = vadd.f32 0.0, %v349
  %v351 = vpop.f32.mrf.mxu0
  %352 = vdwg.mxu0
  %v353 = vadd.f32 %v136, %v350
  %v354 = vxor.u32 %v353, 2147483648
  %v355 = vmul.f32 %v354, 1.442695
  %v356 = vpow.pop %v355
  %v357 = vadd.f32 %v356, 1.0
  %v358 = vrcp.pop %v357
  %v359 = vmul.f32 1.0, %v358
  %v360 = vadd.f32 %v350, %v256
  %362 = vrot.lane.b32.xlu0 %v360, 64
  %v363 = vpop.permute.xlu0 %362
  %v365 = vmul.f32 %v359, %v363
  %367 = vrot.lane.b32.xlu0 %v365, 64
  %v368 = vpop.permute.xlu0 %367
  %v370 = vadd.f32 %v136, %v368
  %v371 = vtanh.pop %v370
  %v372 = vsub.f32 1.0, %v359
  %374 = vrot.lane.b32.xlu0 %v371, 96
  %v375 = vpop.permute.xlu0 %374
  %v377 = vmul.f32 %v372, %v375
  %v378 = vmul.f32 %v359, %v277
  %v379 = vadd.f32 %v377, %v378
  %381 = vrot.lane.b32.xlu0 %v379, 96
  %v382 = vpop.permute.xlu0 %381
  %v383 = vsel %vm173, %v382, 0
  %385 = vmatprep.subr.mxu0 0.0
  %386 = vmatpush1.msra.mxu0 0.0
  %387 = vmatprep.subr.mxu0 0.0
  %388 = vmatpush1.msra.mxu0 0.0
  %389 = vmatprep.subr.mxu0 0.0
  %390 = vmatpush1.msra.mxu0 0.0
  %391 = vmatprep.subr.mxu0 0.0
  %392 = vmatpush1.msra.mxu0 0.0
  %393 = vmatprep.subr.mxu0 0.0
  %394 = vmatpush1.msra.mxu0 0.0
  %395 = vmatprep.subr.mxu0 0.0
  %396 = vmatpush1.msra.mxu0 0.0
  %397 = vmatprep.subr.mxu0 0.0
  %398 = vmatpush1.msra.mxu0 0.0
  %399 = vmatprep.subr.mxu0 0.0
  %400 = vmatpush1.msra.mxu0 0.0
  %401 = vmatprep.subr.mxu0 0.0
  %402 = vmatpush1.msra.mxu0 0.0
  %403 = vmatprep.subr.mxu0 0.0
  %404 = vmatpush1.msra.mxu0 0.0
  %405 = vmatprep.subr.mxu0 0.0
  %406 = vmatpush1.msra.mxu0 0.0
  %407 = vmatprep.subr.mxu0 0.0
  %408 = vmatpush1.msra.mxu0 0.0
  %409 = vmatprep.subr.mxu0 0.0
  %410 = vmatpush1.msra.mxu0 %v15
  %411 = vmatprep.subr.mxu0 0.0
  %412 = vmatpush1.msra.mxu0 %v14
  %413 = vmatprep.subr.mxu0 0.0
  %414 = vmatpush1.msra.mxu0 %v13
  %415 = vmatprep.subr.mxu0 0.0
  %416 = vmatpush1.msra.mxu0 %v12
  %417 = vmatprep.subr.mxu0 0.0
  %418 = vmatpush2.msra.mxu0 0.0
  %419 = vmatprep.subr.mxu0 0.0
  %420 = vmatpush2.msra.mxu0 0.0
  %421 = vmatprep.subr.mxu0 0.0
  %422 = vmatpush2.msra.mxu0 0.0
  %423 = vmatprep.subr.mxu0 0.0
  %424 = vmatpush2.msra.mxu0 0.0
  %425 = vmatprep.subr.mxu0 0.0
  %426 = vmatpush2.msra.mxu0 0.0
  %427 = vmatprep.subr.mxu0 0.0
  %428 = vmatpush2.msra.mxu0 0.0
  %429 = vmatprep.subr.mxu0 0.0
  %430 = vmatpush2.msra.mxu0 0.0
  %431 = vmatprep.subr.mxu0 0.0
  %432 = vmatpush2.msra.mxu0 0.0
  %433 = vmatprep.subr.mxu0 0.0
  %434 = vmatpush2.msra.mxu0 0.0
  %435 = vmatprep.subr.mxu0 0.0
  %436 = vmatpush2.msra.mxu0 0.0
  %437 = vmatprep.subr.mxu0 0.0
  %438 = vmatpush2.msra.mxu0 0.0
  %439 = vmatprep.subr.mxu0 0.0
  %440 = vmatpush2.msra.mxu0 0.0
  %441 = vmatprep.subr.mxu0 0.0
  %442 = vmatpush2.msra.mxu0 0.0
  %443 = vmatprep.subr.mxu0 0.0
  %444 = vmatpush2.msra.mxu0 0.0
  %445 = vmatprep.subr.mxu0 0.0
  %446 = vmatpush2.msra.mxu0 0.0
  %447 = vmatprep.subr.mxu0 0.0
  %448 = vmatpush2.msra.mxu0 0.0
  %449 = vmatprep.mubr.f32.mxu0 0.0
  %450 = vmatmul.mubr.f32.gmra.mxu0 %v383
  %v451 = vpop.f32.mrf.mxu0
  %v452 = vadd.f32 0.0, %v451
  %v453 = vpop.f32.mrf.mxu0
  %454 = vdwg.mxu0
  %v455 = vadd.f32 %v141, %v452
  %v456 = vxor.u32 %v455, 2147483648
  %v457 = vmul.f32 %v456, 1.442695
  %v458 = vpow.pop %v457
  %v459 = vadd.f32 %v458, 1.0
  %v460 = vrcp.pop %v459
  %v461 = vmul.f32 1.0, %v460
  %v462 = vadd.f32 %v452, %v256
  %464 = vrot.lane.b32.xlu0 %v462, 64
  %v465 = vpop.permute.xlu0 %464
  %v467 = vmul.f32 %v461, %v465
  %469 = vrot.lane.b32.xlu0 %v467, 64
  %v470 = vpop.permute.xlu0 %469
  %v472 = vadd.f32 %v141, %v470
  %v473 = vtanh.pop %v472
  %v474 = vsub.f32 1.0, %v461
  %476 = vrot.lane.b32.xlu0 %v473, 96
  %v477 = vpop.permute.xlu0 %476
  %v479 = vmul.f32 %v474, %v477
  %v480 = vmul.f32 %v461, %v379
  %v481 = vadd.f32 %v479, %v480
  %483 = vrot.lane.b32.xlu0 %v481, 96
  %v484 = vpop.permute.xlu0 %483
  %v485 = vsel %vm173, %v484, 0
  %487 = vmatprep.subr.mxu0 0.0
  %488 = vmatpush1.msra.mxu0 0.0
  %489 = vmatprep.subr.mxu0 0.0
  %490 = vmatpush1.msra.mxu0 0.0
  %491 = vmatprep.subr.mxu0 0.0
  %492 = vmatpush1.msra.mxu0 0.0
  %493 = vmatprep.subr.mxu0 0.0
  %494 = vmatpush1.msra.mxu0 0.0
  %495 = vmatprep.subr.mxu0 0.0
  %496 = vmatpush1.msra.mxu0 0.0
  %497 = vmatprep.subr.mxu0 0.0
  %498 = vmatpush1.msra.mxu0 0.0
  %499 = vmatprep.subr.mxu0 0.0
  %500 = vmatpush1.msra.mxu0 0.0
  %501 = vmatprep.subr.mxu0 0.0
  %502 = vmatpush1.msra.mxu0 0.0
  %503 = vmatprep.subr.mxu0 0.0
  %504 = vmatpush1.msra.mxu0 0.0
  %505 = vmatprep.subr.mxu0 0.0
  %506 = vmatpush1.msra.mxu0 0.0
  %507 = vmatprep.subr.mxu0 0.0
  %508 = vmatpush1.msra.mxu0 0.0
  %509 = vmatprep.subr.mxu0 0.0
  %510 = vmatpush1.msra.mxu0 0.0
  %511 = vmatprep.subr.mxu0 0.0
  %512 = vmatpush1.msra.mxu0 %v15
  %513 = vmatprep.subr.mxu0 0.0
  %514 = vmatpush1.msra.mxu0 %v14
  %515 = vmatprep.subr.mxu0 0.0
  %516 = vmatpush1.msra.mxu0 %v13
  %517 = vmatprep.subr.mxu0 0.0
  %518 = vmatpush1.msra.mxu0 %v12
  %519 = vmatprep.subr.mxu0 0.0
  %520 = vmatpush2.msra.mxu0 0.0
  %521 = vmatprep.subr.mxu0 0.0
  %522 = vmatpush2.msra.mxu0 0.0
  %523 = vmatprep.subr.mxu0 0.0
  %524 = vmatpush2.msra.mxu0 0.0
  %525 = vmatprep.subr.mxu0 0.0
  %526 = vmatpush2.msra.mxu0 0.0
  %527 = vmatprep.subr.mxu0 0.0
  %528 = vmatpush2.msra.mxu0 0.0
  %529 = vmatprep.subr.mxu0 0.0
  %530 = vmatpush2.msra.mxu0 0.0
  %531 = vmatprep.subr.mxu0 0.0
  %532 = vmatpush2.msra.mxu0 0.0
  %533 = vmatprep.subr.mxu0 0.0
  %534 = vmatpush2.msra.mxu0 0.0
  %535 = vmatprep.subr.mxu0 0.0
  %536 = vmatpush2.msra.mxu0 0.0
  %537 = vmatprep.subr.mxu0 0.0
  %538 = vmatpush2.msra.mxu0 0.0
  %539 = vmatprep.subr.mxu0 0.0
  %540 = vmatpush2.msra.mxu0 0.0
  %541 = vmatprep.subr.mxu0 0.0
  %542 = vmatpush2.msra.mxu0 0.0
  %543 = vmatprep.subr.mxu0 0.0
  %544 = vmatpush2.msra.mxu0 0.0
  %545 = vmatprep.subr.mxu0 0.0
  %546 = vmatpush2.msra.mxu0 0.0
  %547 = vmatprep.subr.mxu0 0.0
  %548 = vmatpush2.msra.mxu0 0.0
  %549 = vmatprep.subr.mxu0 0.0
  %550 = vmatpush2.msra.mxu0 0.0
  %551 = vmatprep.mubr.f32.mxu0 0.0
  %552 = vmatmul.mubr.f32.gmra.mxu0 %v485
  %v553 = vpop.f32.mrf.mxu0
  %v554 = vadd.f32 0.0, %v553
  %v555 = vpop.f32.mrf.mxu0
  %556 = vdwg.mxu0
  %v557 = vadd.f32 %v146, %v554
  %v558 = vxor.u32 %v557, 2147483648
  %v559 = vmul.f32 %v558, 1.442695
  %v560 = vpow.pop %v559
  %v561 = vadd.f32 %v560, 1.0
  %v562 = vrcp.pop %v561
  %v563 = vmul.f32 1.0, %v562
  %v564 = vadd.f32 %v554, %v256
  %566 = vrot.lane.b32.xlu0 %v564, 64
  %v567 = vpop.permute.xlu0 %566
  %v569 = vmul.f32 %v563, %v567
  %571 = vrot.lane.b32.xlu0 %v569, 64
  %v572 = vpop.permute.xlu0 %571
  %v574 = vadd.f32 %v146, %v572
  %v575 = vtanh.pop %v574
  %v576 = vsub.f32 1.0, %v563
  %578 = vrot.lane.b32.xlu0 %v575, 96
  %v579 = vpop.permute.xlu0 %578
  %v581 = vmul.f32 %v576, %v579
  %v582 = vmul.f32 %v563, %v481
  %v583 = vadd.f32 %v581, %v582
  %585 = vrot.lane.b32.xlu0 %v583, 96
  %v586 = vpop.permute.xlu0 %585
  %v587 = vsel %vm173, %v586, 0
  %589 = vmatprep.subr.mxu0 0.0
  %590 = vmatpush1.msra.mxu0 0.0
  %591 = vmatprep.subr.mxu0 0.0
  %592 = vmatpush1.msra.mxu0 0.0
  %593 = vmatprep.subr.mxu0 0.0
  %594 = vmatpush1.msra.mxu0 0.0
  %595 = vmatprep.subr.mxu0 0.0
  %596 = vmatpush1.msra.mxu0 0.0
  %597 = vmatprep.subr.mxu0 0.0
  %598 = vmatpush1.msra.mxu0 0.0
  %599 = vmatprep.subr.mxu0 0.0
  %600 = vmatpush1.msra.mxu0 0.0
  %601 = vmatprep.subr.mxu0 0.0
  %602 = vmatpush1.msra.mxu0 0.0
  %603 = vmatprep.subr.mxu0 0.0
  %604 = vmatpush1.msra.mxu0 0.0
  %605 = vmatprep.subr.mxu0 0.0
  %606 = vmatpush1.msra.mxu0 0.0
  %607 = vmatprep.subr.mxu0 0.0
  %608 = vmatpush1.msra.mxu0 0.0
  %609 = vmatprep.subr.mxu0 0.0
  %610 = vmatpush1.msra.mxu0 0.0
  %611 = vmatprep.subr.mxu0 0.0
  %612 = vmatpush1.msra.mxu0 0.0
  %613 = vmatprep.subr.mxu0 0.0
  %614 = vmatpush1.msra.mxu0 %v15
  %615 = vmatprep.subr.mxu0 0.0
  %616 = vmatpush1.msra.mxu0 %v14
  %617 = vmatprep.subr.mxu0 0.0
  %618 = vmatpush1.msra.mxu0 %v13
  %619 = vmatprep.subr.mxu0 0.0
  %620 = vmatpush1.msra.mxu0 %v12
  %621 = vmatprep.subr.mxu0 0.0
  %622 = vmatpush2.msra.mxu0 0.0
  %623 = vmatprep.subr.mxu0 0.0
  %624 = vmatpush2.msra.mxu0 0.0
  %625 = vmatprep.subr.mxu0 0.0
  %626 = vmatpush2.msra.mxu0 0.0
  %627 = vmatprep.subr.mxu0 0.0
  %628 = vmatpush2.msra.mxu0 0.0
  %629 = vmatprep.subr.mxu0 0.0
  %630 = vmatpush2.msra.mxu0 0.0
  %631 = vmatprep.subr.mxu0 0.0
  %632 = vmatpush2.msra.mxu0 0.0
  %633 = vmatprep.subr.mxu0 0.0
  %634 = vmatpush2.msra.mxu0 0.0
  %635 = vmatprep.subr.mxu0 0.0
  %636 = vmatpush2.msra.mxu0 0.0
  %637 = vmatprep.subr.mxu0 0.0
  %638 = vmatpush2.msra.mxu0 0.0
  %639 = vmatprep.subr.mxu0 0.0
  %640 = vmatpush2.msra.mxu0 0.0
  %641 = vmatprep.subr.mxu0 0.0
  %642 = vmatpush2.msra.mxu0 0.0
  %643 = vmatprep.subr.mxu0 0.0
  %644 = vmatpush2.msra.mxu0 0.0
  %645 = vmatprep.subr.mxu0 0.0
  %646 = vmatpush2.msra.mxu0 0.0
  %647 = vmatprep.subr.mxu0 0.0
  %648 = vmatpush2.msra.mxu0 0.0
  %649 = vmatprep.subr.mxu0 0.0
  %650 = vmatpush2.msra.mxu0 0.0
  %651 = vmatprep.subr.mxu0 0.0
  %652 = vmatpush2.msra.mxu0 0.0
  %653 = vmatprep.mubr.f32.mxu0 0.0
  %654 = vmatmul.mubr.f32.gmra.mxu0 %v587
  %v655 = vpop.f32.mrf.mxu0
  %v656 = vadd.f32 0.0, %v655
  %v657 = vpop.f32.mrf.mxu0
  %658 = vdwg.mxu0
  %v659 = vadd.f32 %v151, %v656
  %v660 = vxor.u32 %v659, 2147483648
  %v661 = vmul.f32 %v660, 1.442695
  %v662 = vpow.pop %v661
  %v663 = vadd.f32 %v662, 1.0
  %v664 = vrcp.pop %v663
  %v665 = vmul.f32 1.0, %v664
  %v666 = vadd.f32 %v656, %v256
  %668 = vrot.lane.b32.xlu0 %v666, 64
  %v669 = vpop.permute.xlu0 %668
  %v671 = vmul.f32 %v665, %v669
  %673 = vrot.lane.b32.xlu0 %v671, 64
  %v674 = vpop.permute.xlu0 %673
  %v676 = vadd.f32 %v151, %v674
  %v677 = vtanh.pop %v676
  %v678 = vsub.f32 1.0, %v665
  %680 = vrot.lane.b32.xlu0 %v677, 96
  %v681 = vpop.permute.xlu0 %680
  %v683 = vmul.f32 %v678, %v681
  %v684 = vmul.f32 %v665, %v583
  %v685 = vadd.f32 %v683, %v684
  %687 = vrot.lane.b32.xlu0 %v685, 96
  %v688 = vpop.permute.xlu0 %687
  %v689 = vsel %vm173, %v688, 0
  %691 = vmatprep.subr.mxu0 0.0
  %692 = vmatpush1.msra.mxu0 0.0
  %693 = vmatprep.subr.mxu0 0.0
  %694 = vmatpush1.msra.mxu0 0.0
  %695 = vmatprep.subr.mxu0 0.0
  %696 = vmatpush1.msra.mxu0 0.0
  %697 = vmatprep.subr.mxu0 0.0
  %698 = vmatpush1.msra.mxu0 0.0
  %699 = vmatprep.subr.mxu0 0.0
  %700 = vmatpush1.msra.mxu0 0.0
  %701 = vmatprep.subr.mxu0 0.0
  %702 = vmatpush1.msra.mxu0 0.0
  %703 = vmatprep.subr.mxu0 0.0
  %704 = vmatpush1.msra.mxu0 0.0
  %705 = vmatprep.subr.mxu0 0.0
  %706 = vmatpush1.msra.mxu0 0.0
  %707 = vmatprep.subr.mxu0 0.0
  %708 = vmatpush1.msra.mxu0 0.0
  %709 = vmatprep.subr.mxu0 0.0
  %710 = vmatpush1.msra.mxu0 0.0
  %711 = vmatprep.subr.mxu0 0.0
  %712 = vmatpush1.msra.mxu0 0.0
  %713 = vmatprep.subr.mxu0 0.0
  %714 = vmatpush1.msra.mxu0 0.0
  %715 = vmatprep.subr.mxu0 0.0
  %716 = vmatpush1.msra.mxu0 %v15
  %717 = vmatprep.subr.mxu0 0.0
  %718 = vmatpush1.msra.mxu0 %v14
  %719 = vmatprep.subr.mxu0 0.0
  %720 = vmatpush1.msra.mxu0 %v13
  %721 = vmatprep.subr.mxu0 0.0
  %722 = vmatpush1.msra.mxu0 %v12
  %723 = vmatprep.subr.mxu0 0.0
  %724 = vmatpush2.msra.mxu0 0.0
  %725 = vmatprep.subr.mxu0 0.0
  %726 = vmatpush2.msra.mxu0 0.0
  %727 = vmatprep.subr.mxu0 0.0
  %728 = vmatpush2.msra.mxu0 0.0
  %729 = vmatprep.subr.mxu0 0.0
  %730 = vmatpush2.msra.mxu0 0.0
  %731 = vmatprep.subr.mxu0 0.0
  %732 = vmatpush2.msra.mxu0 0.0
  %733 = vmatprep.subr.mxu0 0.0
  %734 = vmatpush2.msra.mxu0 0.0
  %735 = vmatprep.subr.mxu0 0.0
  %736 = vmatpush2.msra.mxu0 0.0
  %737 = vmatprep.subr.mxu0 0.0
  %738 = vmatpush2.msra.mxu0 0.0
  %739 = vmatprep.subr.mxu0 0.0
  %740 = vmatpush2.msra.mxu0 0.0
  %741 = vmatprep.subr.mxu0 0.0
  %742 = vmatpush2.msra.mxu0 0.0
  %743 = vmatprep.subr.mxu0 0.0
  %744 = vmatpush2.msra.mxu0 0.0
  %745 = vmatprep.subr.mxu0 0.0
  %746 = vmatpush2.msra.mxu0 0.0
  %747 = vmatprep.subr.mxu0 0.0
  %748 = vmatpush2.msra.mxu0 0.0
  %749 = vmatprep.subr.mxu0 0.0
  %750 = vmatpush2.msra.mxu0 0.0
  %751 = vmatprep.subr.mxu0 0.0
  %752 = vmatpush2.msra.mxu0 0.0
  %753 = vmatprep.subr.mxu0 0.0
  %754 = vmatpush2.msra.mxu0 0.0
  %755 = vmatprep.mubr.f32.mxu0 0.0
  %756 = vmatmul.mubr.f32.gmra.mxu0 %v689
  %v757 = vpop.f32.mrf.mxu0
  %v758 = vadd.f32 0.0, %v757
  %v759 = vpop.f32.mrf.mxu0
  %760 = vdwg.mxu0
  %v761 = vadd.f32 %v156, %v758
  %v762 = vxor.u32 %v761, 2147483648
  %v763 = vmul.f32 %v762, 1.442695
  %v764 = vpow.pop %v763
  %v765 = vadd.f32 %v764, 1.0
  %v766 = vrcp.pop %v765
  %v767 = vmul.f32 1.0, %v766
  %v768 = vadd.f32 %v758, %v256
  %770 = vrot.lane.b32.xlu0 %v768, 64
  %v771 = vpop.permute.xlu0 %770
  %v773 = vmul.f32 %v767, %v771
  %775 = vrot.lane.b32.xlu0 %v773, 64
  %v776 = vpop.permute.xlu0 %775
  %v778 = vadd.f32 %v156, %v776
  %v779 = vtanh.pop %v778
  %v780 = vsub.f32 1.0, %v767
  %782 = vrot.lane.b32.xlu0 %v779, 96
  %v783 = vpop.permute.xlu0 %782
  %v785 = vmul.f32 %v780, %v783
  %v786 = vmul.f32 %v767, %v685
  %v787 = vadd.f32 %v785, %v786
  %789 = vrot.lane.b32.xlu0 %v787, 96
  %v790 = vpop.permute.xlu0 %789
  %v791 = vsel %vm173, %v790, 0
  %793 = vmatprep.subr.mxu0 0.0
  %794 = vmatpush1.msra.mxu0 0.0
  %795 = vmatprep.subr.mxu0 0.0
  %796 = vmatpush1.msra.mxu0 0.0
  %797 = vmatprep.subr.mxu0 0.0
  %798 = vmatpush1.msra.mxu0 0.0
  %799 = vmatprep.subr.mxu0 0.0
  %800 = vmatpush1.msra.mxu0 0.0
  %801 = vmatprep.subr.mxu0 0.0
  %802 = vmatpush1.msra.mxu0 0.0
  %803 = vmatprep.subr.mxu0 0.0
  %804 = vmatpush1.msra.mxu0 0.0
  %805 = vmatprep.subr.mxu0 0.0
  %806 = vmatpush1.msra.mxu0 0.0
  %807 = vmatprep.subr.mxu0 0.0
  %808 = vmatpush1.msra.mxu0 0.0
  %809 = vmatprep.subr.mxu0 0.0
  %810 = vmatpush1.msra.mxu0 0.0
  %811 = vmatprep.subr.mxu0 0.0
  %812 = vmatpush1.msra.mxu0 0.0
  %813 = vmatprep.subr.mxu0 0.0
  %814 = vmatpush1.msra.mxu0 0.0
  %815 = vmatprep.subr.mxu0 0.0
  %816 = vmatpush1.msra.mxu0 0.0
  %817 = vmatprep.subr.mxu0 0.0
  %818 = vmatpush1.msra.mxu0 %v15
  %819 = vmatprep.subr.mxu0 0.0
  %820 = vmatpush1.msra.mxu0 %v14
  %821 = vmatprep.subr.mxu0 0.0
  %822 = vmatpush1.msra.mxu0 %v13
  %823 = vmatprep.subr.mxu0 0.0
  %824 = vmatpush1.msra.mxu0 %v12
  %825 = vmatprep.subr.mxu0 0.0
  %826 = vmatpush2.msra.mxu0 0.0
  %827 = vmatprep.subr.mxu0 0.0
  %828 = vmatpush2.msra.mxu0 0.0
  %829 = vmatprep.subr.mxu0 0.0
  %830 = vmatpush2.msra.mxu0 0.0
  %831 = vmatprep.subr.mxu0 0.0
  %832 = vmatpush2.msra.mxu0 0.0
  %833 = vmatprep.subr.mxu0 0.0
  %834 = vmatpush2.msra.mxu0 0.0
  %835 = vmatprep.subr.mxu0 0.0
  %836 = vmatpush2.msra.mxu0 0.0
  %837 = vmatprep.subr.mxu0 0.0
  %838 = vmatpush2.msra.mxu0 0.0
  %839 = vmatprep.subr.mxu0 0.0
  %840 = vmatpush2.msra.mxu0 0.0
  %841 = vmatprep.subr.mxu0 0.0
  %842 = vmatpush2.msra.mxu0 0.0
  %843 = vmatprep.subr.mxu0 0.0
  %844 = vmatpush2.msra.mxu0 0.0
  %845 = vmatprep.subr.mxu0 0.0
  %846 = vmatpush2.msra.mxu0 0.0
  %847 = vmatprep.subr.mxu0 0.0
  %848 = vmatpush2.msra.mxu0 0.0
  %849 = vmatprep.subr.mxu0 0.0
  %850 = vmatpush2.msra.mxu0 0.0
  %851 = vmatprep.subr.mxu0 0.0
  %852 = vmatpush2.msra.mxu0 0.0
  %853 = vmatprep.subr.mxu0 0.0
  %854 = vmatpush2.msra.mxu0 0.0
  %855 = vmatprep.subr.mxu0 0.0
  %856 = vmatpush2.msra.mxu0 0.0
  %857 = vmatprep.mubr.f32.mxu0 0.0
  %858 = vmatmul.mubr.f32.gmra.mxu0 %v791
  %v859 = vpop.f32.mrf.mxu0
  %v860 = vadd.f32 0.0, %v859
  %v861 = vpop.f32.mrf.mxu0
  %862 = vdwg.mxu0
  %v863 = vadd.f32 %v161, %v860
  %v864 = vxor.u32 %v863, 2147483648
  %v865 = vmul.f32 %v864, 1.442695
  %v866 = vpow.pop %v865
  %v867 = vadd.f32 %v866, 1.0
  %v868 = vrcp.pop %v867
  %v869 = vmul.f32 1.0, %v868
  %v870 = vadd.f32 %v860, %v256
  %872 = vrot.lane.b32.xlu0 %v870, 64
  %v873 = vpop.permute.xlu0 %872
  %v875 = vmul.f32 %v869, %v873
  %877 = vrot.lane.b32.xlu0 %v875, 64
  %v878 = vpop.permute.xlu0 %877
  %v880 = vadd.f32 %v161, %v878
  %v881 = vtanh.pop %v880
  %v882 = vsub.f32 1.0, %v869
  %884 = vrot.lane.b32.xlu0 %v881, 96
  %v885 = vpop.permute.xlu0 %884
  %v887 = vmul.f32 %v882, %v885
  %v888 = vmul.f32 %v869, %v787
  %v889 = vadd.f32 %v887, %v888
  %891 = vrot.lane.b32.xlu0 %v889, 96
  %v892 = vpop.permute.xlu0 %891
  %v893 = vsel %vm173, %v892, 0
  %895 = vmatprep.subr.mxu0 0.0
  %896 = vmatpush1.msra.mxu0 0.0
  %897 = vmatprep.subr.mxu0 0.0
  %898 = vmatpush1.msra.mxu0 0.0
  %899 = vmatprep.subr.mxu0 0.0
  %900 = vmatpush1.msra.mxu0 0.0
  %901 = vmatprep.subr.mxu0 0.0
  %902 = vmatpush1.msra.mxu0 0.0
  %903 = vmatprep.subr.mxu0 0.0
  %904 = vmatpush1.msra.mxu0 0.0
  %905 = vmatprep.subr.mxu0 0.0
  %906 = vmatpush1.msra.mxu0 0.0
  %907 = vmatprep.subr.mxu0 0.0
  %908 = vmatpush1.msra.mxu0 0.0
  %909 = vmatprep.subr.mxu0 0.0
  %910 = vmatpush1.msra.mxu0 0.0
  %911 = vmatprep.subr.mxu0 0.0
  %912 = vmatpush1.msra.mxu0 0.0
  %913 = vmatprep.subr.mxu0 0.0
  %914 = vmatpush1.msra.mxu0 0.0
  %915 = vmatprep.subr.mxu0 0.0
  %916 = vmatpush1.msra.mxu0 0.0
  %917 = vmatprep.subr.mxu0 0.0
  %918 = vmatpush1.msra.mxu0 0.0
  %919 = vmatprep.subr.mxu0 0.0
  %920 = vmatpush1.msra.mxu0 %v15
  %921 = vmatprep.subr.mxu0 0.0
  %922 = vmatpush1.msra.mxu0 %v14
  %923 = vmatprep.subr.mxu0 0.0
  %924 = vmatpush1.msra.mxu0 %v13
  %925 = vmatprep.subr.mxu0 0.0
  %926 = vmatpush1.msra.mxu0 %v12
  %927 = vmatprep.subr.mxu0 0.0
  %928 = vmatpush2.msra.mxu0 0.0
  %929 = vmatprep.subr.mxu0 0.0
  %930 = vmatpush2.msra.mxu0 0.0
  %931 = vmatprep.subr.mxu0 0.0
  %932 = vmatpush2.msra.mxu0 0.0
  %933 = vmatprep.subr.mxu0 0.0
  %934 = vmatpush2.msra.mxu0 0.0
  %935 = vmatprep.subr.mxu0 0.0
  %936 = vmatpush2.msra.mxu0 0.0
  %937 = vmatprep.subr.mxu0 0.0
  %938 = vmatpush2.msra.mxu0 0.0
  %939 = vmatprep.subr.mxu0 0.0
  %940 = vmatpush2.msra.mxu0 0.0
  %941 = vmatprep.subr.mxu0 0.0
  %942 = vmatpush2.msra.mxu0 0.0
  %943 = vmatprep.subr.mxu0 0.0
  %944 = vmatpush2.msra.mxu0 0.0
  %945 = vmatprep.subr.mxu0 0.0
  %946 = vmatpush2.msra.mxu0 0.0
  %947 = vmatprep.subr.mxu0 0.0
  %948 = vmatpush2.msra.mxu0 0.0
  %949 = vmatprep.subr.mxu0 0.0
  %950 = vmatpush2.msra.mxu0 0.0
  %951 = vmatprep.subr.mxu0 0.0
  %952 = vmatpush2.msra.mxu0 0.0
  %953 = vmatprep.subr.mxu0 0.0
  %954 = vmatpush2.msra.mxu0 0.0
  %955 = vmatprep.subr.mxu0 0.0
  %956 = vmatpush2.msra.mxu0 0.0
  %957 = vmatprep.subr.mxu0 0.0
  %958 = vmatpush2.msra.mxu0 0.0
  %959 = vmatprep.mubr.f32.mxu0 0.0
  %960 = vmatmul.mubr.f32.gmra.mxu0 %v893
  %v961 = vpop.f32.mrf.mxu0
  %v962 = vadd.f32 0.0, %v961
  %v963 = vpop.f32.mrf.mxu0
  %964 = vdwg.mxu0
  %v965 = vadd.f32 %v166, %v962
  %v966 = vxor.u32 %v965, 2147483648
  %v967 = vmul.f32 %v966, 1.442695
  %v968 = vpow.pop %v967
  %v969 = vadd.f32 %v968, 1.0
  %v970 = vrcp.pop %v969
  %v971 = vmul.f32 1.0, %v970
  %v972 = vadd.f32 %v962, %v256
  %974 = vrot.lane.b32.xlu0 %v972, 64
  %v975 = vpop.permute.xlu0 %974
  %v977 = vmul.f32 %v971, %v975
  %979 = vrot.lane.b32.xlu0 %v977, 64
  %v980 = vpop.permute.xlu0 %979
  %v982 = vadd.f32 %v166, %v980
  %v983 = vtanh.pop %v982
  %v984 = vsub.f32 1.0, %v971
  %986 = vrot.lane.b32.xlu0 %v983, 96
  %v987 = vpop.permute.xlu0 %986
  %v989 = vmul.f32 %v984, %v987
  %v990 = vmul.f32 %v971, %v889
  %v991 = vadd.f32 %v989, %v990
  %v992 = vlaneseq
  %v993 = vshrl.u32 %v992, 7
  %v994 = vsub.s32 0, %v993
  %v995 = vrot.slane %v22, %v994
  %997 = vrot.lane.b32.xlu0 %v991, 96
  %v998 = vpop.permute.xlu0 %997
  %v999 = vsel %vm173, %v998, 0
  %1001 = vmatprep.subr.mxu0 0.0
  %1002 = vmatpush1.msra.mxu0 0.0
  %1003 = vmatprep.subr.mxu0 0.0
  %1004 = vmatpush1.msra.mxu0 0.0
  %1005 = vmatprep.subr.mxu0 0.0
  %1006 = vmatpush1.msra.mxu0 0.0
  %1007 = vmatprep.subr.mxu0 0.0
  %1008 = vmatpush1.msra.mxu0 0.0
  %1009 = vmatprep.subr.mxu0 0.0
  %1010 = vmatpush1.msra.mxu0 0.0
  %1011 = vmatprep.subr.mxu0 0.0
  %1012 = vmatpush1.msra.mxu0 0.0
  %1013 = vmatprep.subr.mxu0 0.0
  %1014 = vmatpush1.msra.mxu0 0.0
  %1015 = vmatprep.subr.mxu0 0.0
  %1016 = vmatpush1.msra.mxu0 0.0
  %1017 = vmatprep.subr.mxu0 0.0
  %1018 = vmatpush1.msra.mxu0 0.0
  %1019 = vmatprep.subr.mxu0 0.0
  %1020 = vmatpush1.msra.mxu0 0.0
  %1021 = vmatprep.subr.mxu0 0.0
  %1022 = vmatpush1.msra.mxu0 0.0
  %1023 = vmatprep.subr.mxu0 0.0
  %1024 = vmatpush1.msra.mxu0 0.0
  %1025 = vmatprep.subr.mxu0 0.0
  %1026 = vmatpush1.msra.mxu0 %v19
  %1027 = vmatprep.subr.mxu0 0.0
  %1028 = vmatpush1.msra.mxu0 %v18
  %1029 = vmatprep.subr.mxu0 0.0
  %1030 = vmatpush1.msra.mxu0 %v17
  %1031 = vmatprep.subr.mxu0 0.0
  %1032 = vmatpush1.msra.mxu0 %v16
  %1033 = vmatprep.subr.mxu0 0.0
  %1034 = vmatpush2.msra.mxu0 0.0
  %1035 = vmatprep.subr.mxu0 0.0
  %1036 = vmatpush2.msra.mxu0 0.0
  %1037 = vmatprep.subr.mxu0 0.0
  %1038 = vmatpush2.msra.mxu0 0.0
  %1039 = vmatprep.subr.mxu0 0.0
  %1040 = vmatpush2.msra.mxu0 0.0
  %1041 = vmatprep.subr.mxu0 0.0
  %1042 = vmatpush2.msra.mxu0 0.0
  %1043 = vmatprep.subr.mxu0 0.0
  %1044 = vmatpush2.msra.mxu0 0.0
  %1045 = vmatprep.subr.mxu0 0.0
  %1046 = vmatpush2.msra.mxu0 0.0
  %1047 = vmatprep.subr.mxu0 0.0
  %1048 = vmatpush2.msra.mxu0 0.0
  %1049 = vmatprep.subr.mxu0 0.0
  %1050 = vmatpush2.msra.mxu0 0.0
  %1051 = vmatprep.subr.mxu0 0.0
  %1052 = vmatpush2.msra.mxu0 0.0
  %1053 = vmatprep.subr.mxu0 0.0
  %1054 = vmatpush2.msra.mxu0 0.0
  %1055 = vmatprep.subr.mxu0 0.0
  %1056 = vmatpush2.msra.mxu0 0.0
  %1057 = vmatprep.subr.mxu0 0.0
  %1058 = vmatpush2.msra.mxu0 0.0
  %1059 = vmatprep.subr.mxu0 0.0
  %1060 = vmatpush2.msra.mxu0 0.0
  %1061 = vmatprep.subr.mxu0 0.0
  %1062 = vmatpush2.msra.mxu0 0.0
  %1063 = vmatprep.subr.mxu0 0.0
  %1064 = vmatpush2.msra.mxu0 0.0
  %1065 = vmatprep.mubr.f32.mxu0 0.0
  %1066 = vmatmul.mubr.f32.gmra.mxu0 %v281
  %v1067 = vpop.f32.mrf.mxu0
  %v1068 = vadd.f32 %v995, %v1067
  %v1069 = vpop.f32.mrf.mxu0
  %1070 = vmatprep.mubr.f32.mxu0 0.0
  %1071 = vmatmul.mubr.f32.gmra.mxu0 %v383
  %v1072 = vpop.f32.mrf.mxu0
  %v1073 = vadd.f32 %v995, %v1072
  %v1074 = vpop.f32.mrf.mxu0
  %1075 = vmatprep.mubr.f32.mxu0 0.0
  %1076 = vmatmul.mubr.f32.gmra.mxu0 %v485
  %v1077 = vpop.f32.mrf.mxu0
  %v1078 = vadd.f32 %v995, %v1077
  %v1079 = vpop.f32.mrf.mxu0
  %1080 = vmatprep.mubr.f32.mxu0 0.0
  %1081 = vmatmul.mubr.f32.gmra.mxu0 %v587
  %v1082 = vpop.f32.mrf.mxu0
  %v1083 = vadd.f32 %v995, %v1082
  %v1084 = vpop.f32.mrf.mxu0
  %1085 = vmatprep.mubr.f32.mxu0 0.0
  %1086 = vmatmul.mubr.f32.gmra.mxu0 %v689
  %v1087 = vpop.f32.mrf.mxu0
  %v1088 = vadd.f32 %v995, %v1087
  %v1089 = vpop.f32.mrf.mxu0
  %1090 = vmatprep.mubr.f32.mxu0 0.0
  %1091 = vmatmul.mubr.f32.gmra.mxu0 %v791
  %v1092 = vpop.f32.mrf.mxu0
  %v1093 = vadd.f32 %v995, %v1092
  %v1094 = vpop.f32.mrf.mxu0
  %1095 = vmatprep.mubr.f32.mxu0 0.0
  %1096 = vmatmul.mubr.f32.gmra.mxu0 %v893
  %v1097 = vpop.f32.mrf.mxu0
  %v1098 = vadd.f32 %v995, %v1097
  %v1099 = vpop.f32.mrf.mxu0
  %1100 = vmatprep.mubr.f32.mxu0 0.0
  %1101 = vmatmul.mubr.f32.gmra.mxu0 %v999
  %v1102 = vpop.f32.mrf.mxu0
  %v1103 = vadd.f32 %v995, %v1102
  %v1104 = vpop.f32.mrf.mxu0
  %1105 = vdwg.mxu0
  %vm1106 = vcmask 64512
  %1107 = vst.msk [vmem:[%s2] sm:$0xff] %vm1106, %v1068
  %1108 = vst.msk [vmem:[%s2 + $0x8] sm:$0xff] %vm1106, %v1073
  %1109 = vst.msk [vmem:[%s2 + $0x10] sm:$0xff] %vm1106, %v1078
  %1110 = vst.msk [vmem:[%s2 + $0x18] sm:$0xff] %vm1106, %v1083
  %1111 = vst.msk [vmem:[%s2 + $0x20] sm:$0xff] %vm1106, %v1088
  %1112 = vst.msk [vmem:[%s2 + $0x28] sm:$0xff] %vm1106, %v1093
  %1113 = vst.msk [vmem:[%s2 + $0x30] sm:$0xff] %vm1106, %v1098
  %1114 = vst.msk [vmem:[%s2 + $0x38] sm:$0xff] %vm1106, %v1103
  // Predicated region
  $region10: #{encoder_forward.1} parent=0 // pred_check
    _
  $region11: #{encoder_forward.1} parent=0 // pred_check_branch
    %1116 = sbr.rel (0) target = $region13
  $region12: #{encoder_forward.1} parent=0 // pred_region
    _
  $region13: #{encoder_forward.1} parent=0 // pred_fallthru
    _
  // Predicated region
  $region14: #{encoder_forward.1} parent=0 // pred_check
    _
  $region15: #{encoder_forward.1} parent=0 // pred_check_branch
    %1118 = sbr.rel (0) target = $region17
  $region16: #{encoder_forward.1} parent=0 // pred_region
    _
  $region17: #{encoder_forward.1} parent=0 // pred_fallthru
    _

</llo_original>
